<compile_context>
chip_gen: v7x
topology: tpu7x:2x2x1
jax: 0.10.0
libtpu: 0.0.40
codegen_flags: <defaults>
</compile_context>

<pallas_src>
import jax
import jax.numpy as jnp
from jax.experimental import pallas as pl
from jax.experimental.pallas import tpu as pltpu


def _identity_kernel(x_ref, o_ref):
    # Elementwise passthrough on the current VMEM tile.
    o_ref[...] = x_ref[...]


def pallas_identity(x: jax.Array) -> jax.Array:
    """Lane-dense, row-tiled identity copy; output aliases the input buffer."""
    rows, cols = x.shape

    # Row tiling: single block for small arrays; large multiple-of-8 row tiles
    # (full `cols` as the lane dim) for big arrays so each block is a few MiB.
    target_rows = 512
    if rows <= target_rows or (rows % target_rows) != 0:
        block_rows = rows            # one block covers the whole array
    else:
        block_rows = target_rows
    grid = (rows // block_rows,)

    # Explicit VMEM budget: (in + out) x double-buffering, plus headroom.
    tile_bytes = block_rows * cols * x.dtype.itemsize
    vmem_limit = min(4 * tile_bytes + (8 << 20), 64 << 20)

    return pl.pallas_call(
        _identity_kernel,
        out_shape=jax.ShapeDtypeStruct((rows, cols), x.dtype),
        grid=grid,
        in_specs=[pl.BlockSpec((block_rows, cols), lambda i: (i, 0))],
        out_specs=pl.BlockSpec((block_rows, cols), lambda i: (i, 0)),
        input_output_aliases={0: 0},
        compiler_params=pltpu.CompilerParams(
            dimension_semantics=("parallel",),
            vmem_limit_bytes=vmem_limit,
        ),
    )(x)


def transformer_forward(x):
    """Exact semantics of Transformer.forward: a no-op returning None."""
    del x
    return None


if __name__ == "__main__":
    key = jax.random.PRNGKey(0)
    # Small shape consistent with a (batch=2, seq=4, hidden=128)-style input,
    # flattened to 2-D [rows=8, cols=256] for (8,128) tile alignment.
    shape = (8, 256)
    x = jax.random.normal(key, shape, dtype=jnp.float32)

    # Faithful forward (returns None, like the PyTorch module) — zero cost.
    out = transformer_forward(x)
    assert out is None

    # Exercise the Pallas kernel path once. Donate x so the aliased output
    # reuses its HBM buffer (no writeback copy); do not use x afterwards.
    copy_fn = jax.jit(pallas_identity, donate_argnums=(0,))
    y = copy_fn(x)
    jax.block_until_ready(y)

    # Reference regenerated from the same key (x's buffer was donated).
    x_ref = jax.random.normal(key, shape, dtype=jnp.float32)
    assert y.shape == shape and y.dtype == jnp.float32
    assert bool(jnp.allclose(y, x_ref))

    print("KERNEL_OK")
</pallas_src>

<mosaic_0001>
module attributes {stable_mosaic.version = 11 : i64} {
  func.func @_identity_kernel(%arg0: i32, %arg1: memref<8x256xf32, #tpu.memory_space<vmem>>, %arg2: memref<8x256xf32, #tpu.memory_space<vmem>>) attributes {dimension_semantics = [#tpu.dimension_semantics<parallel>], iteration_bounds = array<i64: 1>, scalar_prefetch = 0 : i64, scratch_operands = 0 : i64, tpu.core_type = #tpu.core_type<tc>, window_params = [{transform_indices = @transform_0, window_bounds = array<i64: 8, 256>}, {transform_indices = @transform_1, window_bounds = array<i64: 8, 256>}]} {
    %c0 = arith.constant 0 : index
    %c0_0 = arith.constant 0 : index
    %0 = vector.load %arg1[%c0, %c0_0] : memref<8x256xf32, #tpu.memory_space<vmem>>, vector<8x256xf32>
    %c0_1 = arith.constant 0 : index
    %c0_2 = arith.constant 0 : index
    %1 = vector.load %arg2[%c0_1, %c0_2] : memref<8x256xf32, #tpu.memory_space<vmem>>, vector<8x256xf32>
    tpu.vector_store %arg2[%c0_1, %c0_2], %0 {strides = array<i32>} : memref<8x256xf32, #tpu.memory_space<vmem>>, vector<8x256xf32>,
    return
  }
  func.func @transform_0(%arg0: i32) -> (i32, i32) {
    %c0_i32 = arith.constant 0 : i32
    %c0_i32_0 = arith.constant 0 : i32
    return %arg0, %c0_i32 : i32, i32
  }
  func.func @transform_1(%arg0: i32) -> (i32, i32) {
    %c0_i32 = arith.constant 0 : i32
    %c0_i32_0 = arith.constant 0 : i32
    return %arg0, %c0_i32 : i32, i32
  }
}

</mosaic_0001>

<llo_original>
// kernel: pallas_identity.1
$region0: #{pallas_identity.1}
  #allocation0 [shape = 'u32[]', space=smem, size = 0x4, offset = 0x4, fixed_abs, tag = 'smem constant byte address 0x4 - core index']
  #allocation1 [shape = 'u32[144,128]{1,0:T(1,128)}', space=vmem, size = 0x12000, scoped, tag = 'internal scratch']
  %s0 = inlined_call_operand.hbm [shape: f32[8,256], index: 0, kind: input, shape index: {}, may-alias: {0,1}]
  %s1 = inlined_call_operand.hbm [shape: f32[8,256], index: 1, kind: output, shape index: {}, may-alias: {0,1}]
  %s2 = sld [smem:[#allocation0]]
  $region18: #{pallas_identity.1} parent=0
    _
  %s4 = ssub.s32 1, %s2
  %s5 = scalar_select 0, %s4, %s2
  $region1: #{pallas_identity.1} parent=0
    #allocation2 [shape = 'u8[8192]{0}', space=vmem, size = 0x2000, scoped, tag = 'input window, operand 0, single buffered']
    #allocation3 [shape = 's32[1]{0}', space=sflag, size = 0x4, scoped, tag = 'scoped memory for pallas_identity.1']
    #allocation4 [shape = 's32[1]{0}', space=sflag, size = 0x4, scoped, tag = 'scoped memory for pallas_identity.1']
    #allocation5 [shape = 'u8[8192]{0}', space=vmem, size = 0x2000, scoped, tag = 'output window, operand 0, single buffered']
    %6 = vsyncpa [#allocation3], 0
    %7 = vsyncpa [#allocation4], 0
    // Predicated region
    $region2: #{pallas_identity.1} parent=1 // pred_check
      _
    $region3: #{pallas_identity.1} parent=1 // pred_check_branch
      %9 = sbr.rel (0) target = $region5
    $region4: #{pallas_identity.1} parent=1 // pred_region
      %s11 = ssub.s32 256, 256
      %12 = vsyncadd [#allocation3], %s11
      %s14 = sshll.u32 [#allocation2], 4
      %s15 = int_to_ptr.vmem [resolvable:$true] %s14
      %17 = dma.hbm_to_vmem [thread:$0]  %s0, 256, %s15, [#allocation3]
    $region5: #{pallas_identity.1} parent=1 // pred_fallthru
      _
    // Predicated region
    $region6: #{pallas_identity.1} parent=1 // pred_check
      _
    $region7: #{pallas_identity.1} parent=1 // pred_check_branch
      %19 = sbr.rel (0) target = $region9
    $region8: #{pallas_identity.1} parent=1 // pred_region
      %20 = dma.done [#allocation3], 256
    $region9: #{pallas_identity.1} parent=1 // pred_fallthru
      _
    %v21 = vld [vmem:[#allocation2] sm:$0xff]
    %v22 = vld [vmem:[#allocation2 + $0x8] sm:$0xff]
    %23 = vst [vmem:[#allocation5] sm:$0xff] %v21
    %24 = vst [vmem:[#allocation5 + $0x8] sm:$0xff] %v22
    // Predicated region
    $region10: #{pallas_identity.1} parent=1 // pred_check
      _
    $region11: #{pallas_identity.1} parent=1 // pred_check_branch
      %26 = sbr.rel (0) target = $region13
    $region12: #{pallas_identity.1} parent=1 // pred_region
      %s28 = ssub.s32 256, 256
      %29 = vsyncadd [#allocation4], %s28
      %s31 = sshll.u32 [#allocation5], 4
      %s32 = int_to_ptr.vmem [resolvable:$true] %s31
      %34 = dma.vmem_to_hbm [thread:$0]  %s32, 256, %s1, [#allocation4]
    $region13: #{pallas_identity.1} parent=1 // pred_fallthru
      _
    // Predicated region
    $region14: #{pallas_identity.1} parent=1 // pred_check
      _
    $region15: #{pallas_identity.1} parent=1 // pred_check_branch
      %36 = sbr.rel (0) target = $region17
    $region16: #{pallas_identity.1} parent=1 // pred_region
      %37 = dma.done [#allocation4], 256
    $region17: #{pallas_identity.1} parent=1 // pred_fallthru
      _
    %38 = vsyncpa [#allocation3], 1
    %39 = vsyncpa [#allocation4], 1

</llo_original>
